<compile_context>
chip_gen: v5e
topology: v5e:2x2
jax: 0.10.0
libtpu: 0.0.40
codegen_flags: <defaults>
</compile_context>

<pallas_src>
import functools

import jax
import jax.numpy as jnp
from jax import lax
from jax.experimental import pallas as pl
from jax.experimental.pallas import tpu as pltpu

_LANE = 128
_MiB = 1024 * 1024
_VMEM_CAP = 48 * _MiB        # total-footprint cap, safe on every generation
_X_BUF_TARGET = 8 * _MiB     # target size for each double-buffered x buffer
_MAX_CHUNKS = 256            # bound on per-step static chunk unroll


def _round_up(a, m):
    return ((a + m - 1) // m) * m


def _pick_hw_tile(hw, bytes_per_lane, budget_bytes):
    """Pick a 128-multiple spatial tile; hw >= 128. Returns (hw_tile, ragged)."""
    cap = (budget_bytes // max(bytes_per_lane, 1)) // _LANE * _LANE
    cap = max(_LANE, min(cap, _MAX_CHUNKS * _LANE))
    if hw % _LANE == 0:
        if hw <= cap:
            return hw, False                      # single full-extent step
        # multi-step: largest 128-multiple divisor of hw under the cap
        best = _LANE
        for t in range(cap, _LANE - 1, -_LANE):
            if hw % t == 0:
                best = t
                break
        if best * 2 >= cap:                       # big enough: no masking needed
            return best, False
    # Ragged: fixed 128-multiple tile <= hw, mask the tail lanes in-kernel.
    t = min(cap, (hw // _LANE) * _LANE)
    return t, (hw % t != 0)


def _attention2d_kernel(x_ref, w1_ref, w2_ref, b2_ref, o_ref, acc_ref,
                        *, hw_total, hw_tile, ragged):
    # x_ref : (b_tile, C, hw_tile)  activation block (caller dtype)
    # w1_ref: (C, hidden) f32, pre-scaled by 1/(H*W)
    # w2_ref: (hidden, K) f32, pre-scaled by 1/temperature
    # b2_ref: (1, K)      f32, pre-scaled by 1/temperature
    # o_ref : (b_tile, 1, K)
    # acc_ref: (b_tile, C, 128) f32 lane-partial-sum accumulator
    s = pl.program_id(1)

    @pl.when(s == 0)
    def _init():
        acc_ref[...] = jnp.zeros_like(acc_ref)

    n_chunks = hw_tile // _LANE
    base = s * hw_tile  # global spatial offset of this block

    # Pure-VPU per-step accumulation: element-wise adds of 128-lane chunks.
    acc = acc_ref[...]
    for c in range(n_chunks):
        chunk = x_ref[:, :, c * _LANE:(c + 1) * _LANE].astype(jnp.float32)
        if ragged:
            lane = base + c * _LANE + lax.broadcasted_iota(
                jnp.int32, (1, 1, _LANE), 2)
            chunk = jnp.where(lane < hw_total, chunk, 0.0)
        acc = acc + chunk
    acc_ref[...] = acc

    @pl.when(s == pl.num_programs(1) - 1)
    def _finalize():
        # Single cross-lane reduce; the 1/(H*W) mean factor is folded into w1.
        pooled = jnp.sum(acc_ref[...], axis=-1)                     # (b_tile, C)
        # Conv2d(in_planes, hidden, 1, bias=False) + ReLU
        h = jnp.dot(pooled, w1_ref[...], preferred_element_type=jnp.float32)
        h = jnp.maximum(h, 0.0)
        # Conv2d(hidden, K, 1, bias=True); temperature folded into w2/b2
        logits = jnp.dot(h, w2_ref[...], preferred_element_type=jnp.float32)
        logits = logits + b2_ref[...]
        # Numerically stable softmax with EXACT divide (runs once per block).
        m = jnp.max(logits, axis=-1, keepdims=True)
        e = jnp.exp(logits - m)
        p = e / jnp.sum(e, axis=-1, keepdims=True)
        o_ref[...] = p.reshape(o_ref.shape).astype(o_ref.dtype)


def attention2d_forward(x_nchw, w1, w2, b2, temperature):
    """x_nchw: (B, C, H, W); w1: (C, hidden); w2: (hidden, K); b2: (K,)."""
    B, C, H, W = x_nchw.shape
    hidden = w1.shape[1]
    K = w2.shape[1]
    assert w1.shape == (C, hidden) and w2.shape == (hidden, K) and b2.shape == (K,)
    HW = H * W

    # Keep the caller's activation dtype for the HBM->VMEM stream.
    x3 = x_nchw.reshape(B, C, HW)
    if HW < _LANE:  # tiny spatial extent: zero-pad (zeros don't change the sum)
        x3 = jnp.pad(x3, ((0, 0), (0, 0), (0, _LANE - HW)))
    hw_arr = x3.shape[-1]

    # Fold mean + temperature into the tiny weights on the host:
    #   mean(x) @ w1      == sum(x) @ (w1 / (H*W))
    #   (h @ w2 + b2) / T == h @ (w2 / T) + b2 / T
    inv_hw = 1.0 / float(HW)
    inv_t = 1.0 / float(temperature)
    w1s = w1.astype(jnp.float32) * inv_hw
    w2s = w2.astype(jnp.float32) * inv_t
    b2s = (b2.astype(jnp.float32) * inv_t).reshape(1, K)

    # Batch tile: largest divisor of B <= 8 (keeps the parallel batch grid >= 2
    # when possible for v7x megacore).  The batch dim is the third-from-last
    # dim of every block it appears in, so it has no (8,128) layout constraint.
    b_tile = 1
    for d in range(min(B, 8), 0, -1):
        if B % d == 0:
            b_tile = d
            break

    itemsize = x3.dtype.itemsize
    bytes_per_lane = b_tile * C * itemsize
    acc_bytes = b_tile * C * _LANE * 4
    w_bytes = 4 * (C * hidden + hidden * K + K)
    fixed_bytes = acc_bytes + 2 * w_bytes + 2 * (b_tile * K * 4) + 2 * _MiB
    per_buf = max(_LANE * bytes_per_lane,
                  min(_X_BUF_TARGET, max(0, _VMEM_CAP - fixed_bytes) // 2))
    hw_tile, ragged = _pick_hw_tile(hw_arr, bytes_per_lane, per_buf)

    grid = (B // b_tile, pl.cdiv(hw_arr, hw_tile))

    x_buf_bytes = b_tile * C * hw_tile * itemsize
    footprint = 2 * x_buf_bytes + fixed_bytes
    vmem_limit = int(max(32 * _MiB,
                         min(_VMEM_CAP, _round_up(footprint + 4 * _MiB, _MiB))))

    kernel = functools.partial(_attention2d_kernel,
                               hw_total=hw_arr, hw_tile=hw_tile, ragged=ragged)

    cost = pl.CostEstimate(
        flops=B * C * hw_arr + 2 * B * C * hidden + 2 * B * hidden * K + 6 * B * K,
        transcendentals=B * K,
        bytes_accessed=x3.size * itemsize
        + 4 * (w1s.size + w2s.size + b2s.size) + B * K * itemsize,
    )

    out3 = pl.pallas_call(
        kernel,
        out_shape=jax.ShapeDtypeStruct((B, 1, K), x3.dtype),
        grid_spec=pltpu.PrefetchScalarGridSpec(
            num_scalar_prefetch=0,
            grid=grid,
            in_specs=[
                pl.BlockSpec((b_tile, C, hw_tile), lambda b, s: (b, 0, s)),  # x
                pl.BlockSpec((C, hidden), lambda b, s: (0, 0)),              # w1
                pl.BlockSpec((hidden, K), lambda b, s: (0, 0)),              # w2
                pl.BlockSpec((1, K), lambda b, s: (0, 0)),                   # b2
            ],
            out_specs=pl.BlockSpec((b_tile, 1, K), lambda b, s: (b, 0, 0)),
            scratch_shapes=[pltpu.VMEM((b_tile, C, _LANE), jnp.float32)],
        ),
        compiler_params=pltpu.CompilerParams(
            dimension_semantics=("parallel", "arbitrary"),
            vmem_limit_bytes=vmem_limit,
        ),
        cost_estimate=cost,
    )(x3, w1s, w2s, b2s)
    return out3.reshape(B, K)


def _reference(x_nchw, w1, w2, b2, temperature):
    pooled = jnp.mean(x_nchw.astype(jnp.float32), axis=(2, 3))
    h = jnp.maximum(pooled @ w1, 0.0)
    logits = (h @ w2 + b2[None, :]) / temperature
    return jax.nn.softmax(logits, axis=1)


def _check(x, w1, w2, b2, temperature):
    out = jax.block_until_ready(attention2d_forward(x, w1, w2, b2, temperature))
    ref = _reference(x, w1, w2, b2, temperature)
    assert out.shape == ref.shape, (out.shape, ref.shape)
    assert jnp.allclose(out.astype(jnp.float32), ref, atol=1e-3, rtol=1e-3), (out, ref)
    assert jnp.allclose(jnp.sum(out.astype(jnp.float32), axis=1), 1.0, atol=1e-3)


if __name__ == "__main__":
    key = jax.random.PRNGKey(0)
    ratios, K, temperature = 0.25, 4, 34          # temperature % 3 == 1

    # ---- Case 1: module-default small shapes (in_planes != 3 path) ----------
    B, C, H, W = 2, 4, 16, 16
    hidden = int(C * ratios) + 1                  # = 2
    k1, k2, k3, k4, key = jax.random.split(key, 5)
    x = jax.random.normal(k1, (B, C, H, W), dtype=jnp.float32)
    w1 = 0.1 * jax.random.normal(k2, (C, hidden), dtype=jnp.float32)
    w2 = 0.1 * jax.random.normal(k3, (hidden, K), dtype=jnp.float32)
    b2 = 0.05 * jax.random.normal(k4, (K,), dtype=jnp.float32)
    _check(x, w1, w2, b2, temperature)

    # ---- Case 2: multi-chunk accumulation + parallel (megacore) batch axis --
    B2, C2, H2, W2 = 16, 8, 64, 64
    hidden2 = int(C2 * ratios) + 1                # = 3
    k1, k2, k3, k4, key = jax.random.split(key, 5)
    x2 = jax.random.normal(k1, (B2, C2, H2, W2), dtype=jnp.float32)
    w12 = 0.1 * jax.random.normal(k2, (C2, hidden2), dtype=jnp.float32)
    w22 = 0.1 * jax.random.normal(k3, (hidden2, K), dtype=jnp.float32)
    b22 = 0.05 * jax.random.normal(k4, (K,), dtype=jnp.float32)
    _check(x2, w12, w22, b22, temperature)

    # ---- Case 3: spatial extent < 128 lanes (zero-pad path) -----------------
    B3, C3, H3, W3 = 2, 4, 10, 10
    hidden3 = int(C3 * ratios) + 1
    k1, k2, k3, k4, key = jax.random.split(key, 5)
    x3_ = jax.random.normal(k1, (B3, C3, H3, W3), dtype=jnp.float32)
    w13 = 0.1 * jax.random.normal(k2, (C3, hidden3), dtype=jnp.float32)
    w23 = 0.1 * jax.random.normal(k3, (hidden3, K), dtype=jnp.float32)
    b23 = 0.05 * jax.random.normal(k4, (K,), dtype=jnp.float32)
    _check(x3_, w13, w23, b23, temperature)

    # ---- Case 4: non-128-divisible spatial extent + odd batch (mask path) ---
    B4, C4, H4, W4 = 3, 5, 20, 20
    hidden4 = int(C4 * ratios) + 1
    k1, k2, k3, k4, key = jax.random.split(key, 5)
    x4 = jax.random.normal(k1, (B4, C4, H4, W4), dtype=jnp.float32)
    w14 = 0.1 * jax.random.normal(k2, (C4, hidden4), dtype=jnp.float32)
    w24 = 0.1 * jax.random.normal(k3, (hidden4, K), dtype=jnp.float32)
    b24 = 0.05 * jax.random.normal(k4, (K,), dtype=jnp.float32)
    _check(x4, w14, w24, b24, temperature)

    print("KERNEL_OK")
</pallas_src>

<mosaic_0001>
module attributes {stable_mosaic.version = 11 : i64} {
  func.func @_attention2d_kernel(%arg0: i32, %arg1: i32, %arg2: memref<2x4x256xf32, #tpu.memory_space<vmem>>, %arg3: memref<4x2xf32, #tpu.memory_space<vmem>>, %arg4: memref<2x4xf32, #tpu.memory_space<vmem>>, %arg5: memref<1x4xf32, #tpu.memory_space<vmem>>, %arg6: memref<2x1x4xf32, #tpu.memory_space<vmem>>, %arg7: memref<2x4x128xf32, #tpu.memory_space<vmem>>) attributes {dimension_semantics = [#tpu.dimension_semantics<parallel>, #tpu.dimension_semantics<arbitrary>], iteration_bounds = array<i64: 1, 1>, scalar_prefetch = 0 : i64, scratch_operands = 1 : i64, tpu.core_type = #tpu.core_type<tc>, window_params = [{transform_indices = @transform_0, window_bounds = array<i64: 2, 4, 256>}, {pipeline_mode = #tpu.pipeline_mode<synchronous>, transform_indices = @transform_1, window_bounds = array<i64: 4, 2>}, {pipeline_mode = #tpu.pipeline_mode<synchronous>, transform_indices = @transform_2, window_bounds = array<i64: 2, 4>}, {pipeline_mode = #tpu.pipeline_mode<synchronous>, transform_indices = @transform_3, window_bounds = array<i64: 1, 4>}, {transform_indices = @transform_4, window_bounds = array<i64: 2, 1, 4>}]} {
    %c0_i32 = arith.constant 0 : i32
    %0 = arith.cmpi eq, %arg1, %c0_i32 : i32
    %1 = arith.extui %0 : i1 to i32
    %c0_i32_0 = arith.constant 0 : i32
    %2 = arith.cmpi ne, %1, %c0_i32_0 : i32
    scf.if %2 {
      %cst = arith.constant 0.000000e+00 : f32
      %12 = vector.broadcast %cst : f32 to vector<2x4x128xf32>
      %c0_13 = arith.constant 0 : index
      %c0_14 = arith.constant 0 : index
      %c0_15 = arith.constant 0 : index
      %13 = vector.load %arg7[%c0_13, %c0_14, %c0_15] : memref<2x4x128xf32, #tpu.memory_space<vmem>>, vector<2x4x128xf32>
      tpu.vector_store %arg7[%c0_13, %c0_14, %c0_15], %12 {strides = array<i32>} : memref<2x4x128xf32, #tpu.memory_space<vmem>>, vector<2x4x128xf32>,
    } else {
    }
    %c0 = arith.constant 0 : index
    %c0_1 = arith.constant 0 : index
    %c0_2 = arith.constant 0 : index
    %3 = vector.load %arg7[%c0, %c0_1, %c0_2] : memref<2x4x128xf32, #tpu.memory_space<vmem>>, vector<2x4x128xf32>
    %c0_3 = arith.constant 0 : index
    %c0_4 = arith.constant 0 : index
    %c0_5 = arith.constant 0 : index
    %4 = vector.load %arg2[%c0_3, %c0_4, %c0_5] : memref<2x4x256xf32, #tpu.memory_space<vmem>>, vector<2x4x128xf32>
    %5 = arith.addf %3, %4 : vector<2x4x128xf32>
    %c0_6 = arith.constant 0 : index
    %c0_7 = arith.constant 0 : index
    %c128 = arith.constant 128 : index
    %6 = vector.load %arg2[%c0_6, %c0_7, %c128] : memref<2x4x256xf32, #tpu.memory_space<vmem>>, vector<2x4x128xf32>
    %7 = arith.addf %5, %6 : vector<2x4x128xf32>
    %c0_8 = arith.constant 0 : index
    %c0_9 = arith.constant 0 : index
    %c0_10 = arith.constant 0 : index
    %8 = vector.load %arg7[%c0_8, %c0_9, %c0_10] : memref<2x4x128xf32, #tpu.memory_space<vmem>>, vector<2x4x128xf32>
    tpu.vector_store %arg7[%c0_8, %c0_9, %c0_10], %7 {strides = array<i32>} : memref<2x4x128xf32, #tpu.memory_space<vmem>>, vector<2x4x128xf32>,
    %c0_i32_11 = arith.constant 0 : i32
    %9 = arith.cmpi eq, %arg1, %c0_i32_11 : i32
    %10 = arith.extui %9 : i1 to i32
    %c0_i32_12 = arith.constant 0 : i32
    %11 = arith.cmpi ne, %10, %c0_i32_12 : i32
    scf.if %11 {
      %c0_13 = arith.constant 0 : index
      %c0_14 = arith.constant 0 : index
      %c0_15 = arith.constant 0 : index
      %12 = vector.load %arg7[%c0_13, %c0_14, %c0_15] : memref<2x4x128xf32, #tpu.memory_space<vmem>>, vector<2x4x128xf32>
      %cst = arith.constant dense<0.000000e+00> : vector<2x4xf32>
      %13 = vector.multi_reduction <add>, %12, %cst [2] : vector<2x4x128xf32> to vector<2x4xf32>
      %c0_16 = arith.constant 0 : index
      %c0_17 = arith.constant 0 : index
      %14 = vector.load %arg3[%c0_16, %c0_17] : memref<4x2xf32, #tpu.memory_space<vmem>>, vector<4x2xf32>
      %cst_18 = arith.constant dense<0.000000e+00> : vector<2x2xf32>
      %15 = tpu.matmul %13, %14, %cst_18 {dimension_numbers = #tpu.dot_dimension_numbers<[1], [0], [0], [1], [0, 0, 1, 1], [], []>} : vector<2x4xf32>, vector<4x2xf32>, vector<2x2xf32> -> vector<2x2xf32>
      %cst_19 = arith.constant 0.000000e+00 : f32
      %16 = vector.broadcast %cst_19 : f32 to vector<2x2xf32>
      %17 = arith.maximumf %15, %16 : vector<2x2xf32>
      %c0_20 = arith.constant 0 : index
      %c0_21 = arith.constant 0 : index
      %18 = vector.load %arg4[%c0_20, %c0_21] : memref<2x4xf32, #tpu.memory_space<vmem>>, vector<2x4xf32>
      %cst_22 = arith.constant dense<0.000000e+00> : vector<2x4xf32>
      %19 = tpu.matmul %17, %18, %cst_22 {dimension_numbers = #tpu.dot_dimension_numbers<[1], [0], [0], [1], [0, 0, 1, 1], [], []>} : vector<2x2xf32>, vector<2x4xf32>, vector<2x4xf32> -> vector<2x4xf32>
      %c0_23 = arith.constant 0 : index
      %c0_24 = arith.constant 0 : index
      %20 = vector.load %arg5[%c0_23, %c0_24] : memref<1x4xf32, #tpu.memory_space<vmem>>, vector<1x4xf32>
      %21 = vector.broadcast %20 : vector<1x4xf32> to vector<2x4xf32>
      %22 = arith.addf %19, %21 : vector<2x4xf32>
      %cst_25 = arith.constant dense<0xFF800000> : vector<2xf32>
      %23 = vector.multi_reduction <maximumf>, %22, %cst_25 [1] : vector<2x4xf32> to vector<2xf32>
      %24 = vector.shape_cast %23 : vector<2xf32> to vector<2x1xf32>
      %25 = vector.broadcast %24 : vector<2x1xf32> to vector<2x4xf32>
      %26 = arith.subf %22, %25 : vector<2x4xf32>
      %27 = math.exp %26 : vector<2x4xf32>
      %cst_26 = arith.constant dense<0.000000e+00> : vector<2xf32>
      %28 = vector.multi_reduction <add>, %27, %cst_26 [1] : vector<2x4xf32> to vector<2xf32>
      %29 = vector.shape_cast %28 : vector<2xf32> to vector<2x1xf32>
      %30 = vector.broadcast %29 : vector<2x1xf32> to vector<2x4xf32>
      %31 = arith.divf %27, %30 : vector<2x4xf32>
      %32 = vector.shape_cast %31 : vector<2x4xf32> to vector<2x1x4xf32>
      %c0_27 = arith.constant 0 : index
      %c0_28 = arith.constant 0 : index
      %c0_29 = arith.constant 0 : index
      %33 = vector.load %arg6[%c0_27, %c0_28, %c0_29] : memref<2x1x4xf32, #tpu.memory_space<vmem>>, vector<2x1x4xf32>
      tpu.vector_store %arg6[%c0_27, %c0_28, %c0_29], %32 {strides = array<i32>} : memref<2x1x4xf32, #tpu.memory_space<vmem>>, vector<2x1x4xf32>,
    } else {
    }
    return
  }
  func.func @transform_0(%arg0: i32, %arg1: i32) -> (i32, i32, i32) {
    %c0_i32 = arith.constant 0 : i32
    %c0_i32_0 = arith.constant 0 : i32
    return %arg0, %c0_i32, %arg1 : i32, i32, i32
  }
  func.func @transform_1(%arg0: i32, %arg1: i32) -> (i32, i32) {
    %c0_i32 = arith.constant 0 : i32
    %c0_i32_0 = arith.constant 0 : i32
    %c0_i32_1 = arith.constant 0 : i32
    return %c0_i32, %c0_i32_0 : i32, i32
  }
  func.func @transform_2(%arg0: i32, %arg1: i32) -> (i32, i32) {
    %c0_i32 = arith.constant 0 : i32
    %c0_i32_0 = arith.constant 0 : i32
    %c0_i32_1 = arith.constant 0 : i32
    return %c0_i32, %c0_i32_0 : i32, i32
  }
  func.func @transform_3(%arg0: i32, %arg1: i32) -> (i32, i32) {
    %c0_i32 = arith.constant 0 : i32
    %c0_i32_0 = arith.constant 0 : i32
    %c0_i32_1 = arith.constant 0 : i32
    return %c0_i32, %c0_i32_0 : i32, i32
  }
  func.func @transform_4(%arg0: i32, %arg1: i32) -> (i32, i32, i32) {
    %c0_i32 = arith.constant 0 : i32
    %c0_i32_0 = arith.constant 0 : i32
    %c0_i32_1 = arith.constant 0 : i32
    return %arg0, %c0_i32, %c0_i32_0 : i32, i32, i32
  }
}

</mosaic_0001>

<llo_original>
// kernel: tpu_custom_call.1
$region0: #{tpu_custom_call.1}
  #allocation0 [shape = 'u32[]', space=smem, size = 0x4, offset = 0x4, fixed_abs, tag = 'smem constant byte address 0x4 - core index']
  #allocation1 [shape = 'u32[72,128]{1,0:T(1,128)}', space=vmem, size = 0x9000, scoped, tag = 'internal scratch']
  #allocation2 [shape = 'f32[2,4,128]{2,1,0:T(4,128)}', space=vmem, size = 0x1000, scoped, tag = 'scratch operand']
  %s0 = inlined_call_operand.hbm [shape: f32[2,4,256], index: 0, kind: input, shape index: {}]
  %s1 = inlined_call_operand.vmem [shape: f32[4,2], index: 1, kind: input, shape index: {}]
  %s2 = inlined_call_operand.vmem [shape: f32[2,4], index: 2, kind: input, shape index: {}]
  %s3 = inlined_call_operand.vmem [shape: f32[1,4], index: 3, kind: input, shape index: {}]
  %s4 = inlined_call_operand.hbm [shape: f32[2,1,4], index: 4, kind: output, shape index: {}]
  %s5 = sld [smem:[#allocation0]]
  $region38: #{tpu_custom_call.1} parent=0
    _
  %s7 = ssub.s32 1, %s5
  %s8 = scalar_select 0, %s7, %s5
  $region1: #{tpu_custom_call.1} parent=0
    #allocation3 [shape = 'u8[8192]{0}', space=vmem, size = 0x2000, scoped, tag = 'input window, operand 0, single buffered']
    #allocation4 [shape = 's32[1]{0}', space=sflag, size = 0x4, scoped, tag = 'scoped memory for tpu_custom_call.1']
    #allocation5 [shape = 's32[1]{0}', space=sflag, size = 0x4, scoped, tag = 'scoped memory for tpu_custom_call.1']
    #allocation6 [shape = 'u8[1024]{0}', space=vmem, size = 0x400, scoped, tag = 'output window, operand 0, single buffered']
    %9 = vsyncpa [#allocation4], 0
    %10 = vsyncpa [#allocation5], 0
    // Predicated region
    $region2: #{tpu_custom_call.1} parent=1 // pred_check
      _
    $region3: #{tpu_custom_call.1} parent=1 // pred_check_branch
      %12 = sbr.rel (0) target = $region5
    $region4: #{tpu_custom_call.1} parent=1 // pred_region
      %14 = vsyncadd [#allocation4], 0
      %s15 = sshll.u32 %s0, 4
      %s16 = int_to_ptr.hbm [resolvable:$true] %s15
      %s17 = sshll.u32 [#allocation3], 4
      %s18 = int_to_ptr.vmem [resolvable:$true] %s17
      %23 = dma.hbm_to_vmem [thread:$0]  %s16, 256, %s18, [#allocation4], 128, 128, 8
    $region5: #{tpu_custom_call.1} parent=1 // pred_fallthru
      _
    // Predicated region
    $region6: #{tpu_custom_call.1} parent=1 // pred_check
      _
    $region7: #{tpu_custom_call.1} parent=1 // pred_check_branch
      %25 = sbr.rel (0) target = $region9
    $region8: #{tpu_custom_call.1} parent=1 // pred_region
      _
    $region9: #{tpu_custom_call.1} parent=1 // pred_fallthru
      _
    // Predicated region
    $region10: #{tpu_custom_call.1} parent=1 // pred_check
      _
    $region11: #{tpu_custom_call.1} parent=1 // pred_check_branch
      %27 = sbr.rel (0) target = $region13
    $region12: #{tpu_custom_call.1} parent=1 // pred_region
      _
    $region13: #{tpu_custom_call.1} parent=1 // pred_fallthru
      _
    // Predicated region
    $region14: #{tpu_custom_call.1} parent=1 // pred_check
      _
    $region15: #{tpu_custom_call.1} parent=1 // pred_check_branch
      %29 = sbr.rel (0) target = $region17
    $region16: #{tpu_custom_call.1} parent=1 // pred_region
      _
    $region17: #{tpu_custom_call.1} parent=1 // pred_fallthru
      _
    // Predicated region
    $region18: #{tpu_custom_call.1} parent=1 // pred_check
      _
    $region19: #{tpu_custom_call.1} parent=1 // pred_check_branch
      %31 = sbr.rel (0) target = $region21
    $region20: #{tpu_custom_call.1} parent=1 // pred_region
      %33 = dma.done [#allocation4], 256
    $region21: #{tpu_custom_call.1} parent=1 // pred_fallthru
      _
    %p34 = scmp.eq.s32.totalorder 0, 0
    // Predicated region
    $region22: #{tpu_custom_call.1} parent=1 // pred_check
      %p35 = pneg %p34
    $region23: #{tpu_custom_call.1} parent=1 // pred_check_branch
      %37 = sbr.rel (%p35) target = $region25
    $region24: #{tpu_custom_call.1} parent=1 // pred_region
      %38 = vst [vmem:[#allocation2] sm:$0xf] 0.0
      %39 = vst [vmem:[#allocation2 + $0x4] sm:$0xf] 0.0
    $region25: #{tpu_custom_call.1} parent=1 // pred_fallthru
      _
    %v40 = vld [vmem:[#allocation2] sm:$0xf]
    %v41 = vld [vmem:[#allocation2 + $0x4] sm:$0xf]
    %v42 = vld [vmem:[#allocation3] sm:$0xf]
    %v43 = vld [vmem:[#allocation3 + $0x8] sm:$0xf]
    %v44 = vadd.f32 %v40, %v42
    %v45 = vadd.f32 %v41, %v43
    %v46 = vld [vmem:[#allocation3 + $0x4] sm:$0xf]
    %v47 = vld [vmem:[#allocation3 + $0xc] sm:$0xf]
    %v48 = vadd.f32 %v44, %v46
    %v49 = vadd.f32 %v45, %v47
    %50 = vst [vmem:[#allocation2] sm:$0xf] %v48
    %51 = vst [vmem:[#allocation2 + $0x4] sm:$0xf] %v49
    // Predicated region
    $region26: #{tpu_custom_call.1} parent=1 // pred_check
      %p52 = pneg %p34
    $region27: #{tpu_custom_call.1} parent=1 // pred_check_branch
      %54 = sbr.rel (%p52) target = $region29
    $region28: #{tpu_custom_call.1} parent=1 // pred_region
      %v55 = vld [vmem:[#allocation2] sm:$0xf]
      %v56 = vld [vmem:[#allocation2 + $0x4] sm:$0xf]
      %vm57 = vcmask 1043456
      %v58 = vsel %vm57, %v55, 0.0
      %59 = vadd.xlane.f32.xlu0 %v58
      %v60 = vpop.xlane.xlu0 %59
      %v61 = vsel %vm57, %v56, 0.0
      %62 = vadd.xlane.f32.xlu0 %v61
      %v63 = vpop.xlane.xlu0 %62
      %v64 = vld [vmem:[%s1] sm:$0xf]
      %v67 = vlaneseq
      %v68 = vand.u32 %v67, 127
      %v69 = vperm.slane %v60, %v68
      %v70 = vperm.slane %v63, %v68
      %vm71 = vcmask 1041409
      %v72 = vsel %vm71, %v70, %v69
      %vm73 = vcmask 31744
      %v74 = vsel %vm73, %v72, 0
      %v77 = vsel %vm57, %v64, 0
      %79 = vmatpush.msra.mxu0 0.0
      %80 = vmatpush.msra.mxu0 0.0
      %81 = vmatpush.msra.mxu0 0.0
      %82 = vmatpush.msra.mxu0 0.0
      %83 = vmatpush.msra.mxu0 0.0
      %84 = vmatpush.msra.mxu0 0.0
      %85 = vmatpush.msra.mxu0 0.0
      %86 = vmatpush.msra.mxu0 0.0
      %87 = vmatpush.msra.mxu0 0.0
      %88 = vmatpush.msra.mxu0 0.0
      %89 = vmatpush.msra.mxu0 0.0
      %90 = vmatpush.msra.mxu0 0.0
      %91 = vmatpush.msra.mxu0 0.0
      %92 = vmatpush.msra.mxu0 0.0
      %93 = vmatpush.msra.mxu0 0.0
      %94 = vmatpush.msra.mxu0 %v77
      %95 = vmatmul.f32.gmra.mxu0 %v74
      %v96 = vpop.f32.mrf.mxu0
      %v97 = vadd.f32 0.0, %v96
      %98 = vdwg.mxu0
      %v99 = vmax.f32 %v97, 0.0
      %v100 = vld [vmem:[%s2] sm:$0x3]
      %v101 = vld [vmem:[%s3] sm:$0x1]
      %v103 = vperm.slane %v101, 0
      %vm105 = vcmask 15360
      %v107 = vsel %vm105, %v99, 0
      %vm109 = vcmask 1041408
      %v111 = vsel %vm109, %v100, 0
      %113 = vmatpush.msra.mxu0 0.0
      %114 = vmatpush.msra.mxu0 0.0
      %115 = vmatpush.msra.mxu0 0.0
      %116 = vmatpush.msra.mxu0 0.0
      %117 = vmatpush.msra.mxu0 0.0
      %118 = vmatpush.msra.mxu0 0.0
      %119 = vmatpush.msra.mxu0 0.0
      %120 = vmatpush.msra.mxu0 0.0
      %121 = vmatpush.msra.mxu0 0.0
      %122 = vmatpush.msra.mxu0 0.0
      %123 = vmatpush.msra.mxu0 0.0
      %124 = vmatpush.msra.mxu0 0.0
      %125 = vmatpush.msra.mxu0 0.0
      %126 = vmatpush.msra.mxu0 0.0
      %127 = vmatpush.msra.mxu0 0.0
      %128 = vmatpush.msra.mxu0 %v111
      %129 = vmatmul.f32.gmra.mxu0 %v107
      %v130 = vpop.f32.mrf.mxu0
      %v131 = vadd.f32 %v103, %v130
      %132 = vdwg.mxu0
      %vm133 = vcmask 25600
      %v134 = vsel %vm133, %v131, -inf
      %135 = vmax.xlane.f32.xlu0 %v134
      %v136 = vpop.xlane.xlu0 %135
      %v137 = vsub.f32 %v131, %v136
      %v138 = vmul.f32 %v137, 1.442695
      %v139 = vpow.pop %v138
      %v140 = vsel %vm133, %v139, 0.0
      %141 = vadd.xlane.f32.xlu0 %v140
      %v142 = vpop.xlane.xlu0 %141
      %v143 = vrcp.pop %v142
      %v144 = vmul.f32 %v142, %v143
      %v145 = vsub.f32 1.0, %v144
      %v146 = vmul.f32 %v143, %v145
      %v147 = vadd.f32 %v143, %v146
      %vm148 = vweird.f32 %v142
      %vm149 = vweird.f32 %v143
      %vm150 = vmor %vm148, %vm149
      %v151 = vsel %vm150, %v143, %v147
      %v152 = vand.u32 2147483647, %v142
      %vm153 = vcmp.eq.f32.partialorder %v152, 8.507059e+37
      %v154 = vand.u32 %v142, 2147483648
      %v155 = vor.u32 1.1754944e-38, %v154
      %v156 = vsel %vm153, %v155, %v151
      %v157 = vmul.f32 %v139, %v156
      %v159 = vrot.slane %v157, 1
      %vm161 = vcmask 24576
      %162 = vst.msk [vmem:[#allocation6] sm:$0x1] %vm161, %v157
      %163 = vst.msk [vmem:[#allocation6 + $0x1] sm:$0x1] %vm161, %v159
    $region29: #{tpu_custom_call.1} parent=1 // pred_fallthru
      _
    // Predicated region
    $region30: #{tpu_custom_call.1} parent=1 // pred_check
      _
    $region31: #{tpu_custom_call.1} parent=1 // pred_check_branch
      %165 = sbr.rel (0) target = $region33
    $region32: #{tpu_custom_call.1} parent=1 // pred_region
      %167 = vsyncadd [#allocation5], 0
      %s168 = sshll.u32 [#allocation6], 4
      %s169 = int_to_ptr.vmem [resolvable:$true] %s168
      %s170 = sshll.u32 %s4, 4
      %s171 = int_to_ptr.hbm [resolvable:$true] %s170
      %176 = dma.vmem_to_hbm [thread:$0]  %s169, 32, %s171, [#allocation5], 16, 16, 1
    $region33: #{tpu_custom_call.1} parent=1 // pred_fallthru
      _
    // Predicated region
    $region34: #{tpu_custom_call.1} parent=1 // pred_check
      _
    $region35: #{tpu_custom_call.1} parent=1 // pred_check_branch
      %178 = sbr.rel (0) target = $region37
    $region36: #{tpu_custom_call.1} parent=1 // pred_region
      %180 = dma.done [#allocation5], 32
    $region37: #{tpu_custom_call.1} parent=1 // pred_fallthru
      _
    %181 = vsyncpa [#allocation4], 1
    %182 = vsyncpa [#allocation5], 1

</llo_original>
